<compile_context>
chip_gen: v5e
topology: v5e:2x2
jax: 0.10.0
libtpu: 0.0.40
codegen_flags: <defaults>
</compile_context>

<pallas_src>
from functools import partial

import numpy as np
import jax
import jax.numpy as jnp
from jax import lax
from jax.experimental import pallas as pl
from jax.experimental.pallas import tpu as pltpu


def _crf_kernel(p_ref, x_ref, y_ref, params_ref, o_ref, *, n_iters, din, dout):
    """Runs `n_iters` CRF message-passing rounds for the whole (flattened) batch.

    p_ref      : (BN, BN)  block-diagonal padded adjacency (whole batch, flat)
    x_ref      : (BN, Din) node features, flattened over (batch, node)
    y_ref      : (BN, Dout) current label distributions, flattened
    params_ref : (Din + Dout + 1, Dout)  == [Wx ; Wt ; bias]
    o_ref      : (BN, Dout)
    """
    p = p_ref[...]                                                   # (BN, BN)

    # torch.nn.functional.normalize(P, p=1, dim=1): divide every column by
    # max(sum_i |P[i, j]|, 1e-12).  P is constant across rounds -> normalize
    # once, outside the iteration loop.
    col_l1 = jnp.maximum(jnp.sum(jnp.abs(p), axis=0, keepdims=True), 1e-12)
    p_norm = p / col_l1                                              # (BN, BN)

    wx = params_ref[:din, :]                                         # (Din,  Dout)
    wt = params_ref[din:din + dout, :]                               # (Dout, Dout)
    bias = params_ref[din + dout:, :]                                # (1,    Dout)

    # Loop-invariant part of the concat-Linear:
    #   concat([X, T]) @ W^T + b == (X @ Wx + b) + T @ Wt
    xw_b = jnp.dot(x_ref[...], wx, preferred_element_type=jnp.float32) + bias

    def one_round(_, y):
        # Message passing: T = P_norm @ Y — one fat 2-D MXU matmul for the
        # whole flattened batch (block-diagonal P keeps graphs separate).
        t = jnp.dot(p_norm, y, preferred_element_type=jnp.float32)   # (BN, Dout)
        logits = xw_b + jnp.dot(t, wt, preferred_element_type=jnp.float32)
        # Numerically-stable softmax over classes (exact denominator).
        m = jnp.max(logits, axis=-1, keepdims=True)
        e = jnp.exp(logits - m)
        return e / jnp.sum(e, axis=-1, keepdims=True)

    y = lax.fori_loop(0, n_iters, one_round, y_ref[...], unroll=True)
    o_ref[...] = y.astype(o_ref.dtype)


@partial(jax.jit, static_argnames=("n_iters",))
def general_crf_forward(P_pad, X_pad, Y_pad, W_cat, bias, *, n_iters=1):
    """P_pad: (B,N,N), X_pad: (B,N,Din), Y_pad: (B,N,Dout),
       W_cat: (Din+Dout, Dout) (torch Linear weight, transposed),
       bias:  (1, Dout)                                   -> (B, N, Dout)."""
    B, N, _ = P_pad.shape
    Din = X_pad.shape[-1]
    Dout = Y_pad.shape[-1]
    BN = B * N

    # All layout plumbing happens here in XLA, never inside the kernel
    # (in-kernel reshapes are not views).  Block-diagonal adjacency keeps the
    # per-graph column L1 normalization and message passing exact.
    eye = jnp.eye(B, dtype=P_pad.dtype)
    P_bd = jnp.einsum("bij,bc->bicj", P_pad, eye).reshape(BN, BN)    # (BN, BN)
    X_flat = X_pad.reshape(BN, Din)
    Y_flat = Y_pad.reshape(BN, Dout)

    # Pack weights + bias into one slab -> a single parameter DMA.
    params = jnp.concatenate([W_cat, bias], axis=0)                  # (Din+Dout+1, Dout)

    flops = (2 * BN * Din * Dout                                      # hoisted X @ Wx
             + n_iters * (2 * BN * BN * Dout + 2 * BN * Dout * Dout))
    bytes_accessed = 4 * (BN * BN + BN * Din + 2 * BN * Dout
                          + (Din + Dout + 1) * Dout)

    vmem_spec = pl.BlockSpec(memory_space=pltpu.MemorySpace.VMEM)
    out_flat = pl.pallas_call(
        partial(_crf_kernel, n_iters=n_iters, din=Din, dout=Dout),
        out_shape=jax.ShapeDtypeStruct((BN, Dout), jnp.float32),
        in_specs=[vmem_spec, vmem_spec, vmem_spec, vmem_spec],
        out_specs=vmem_spec,
        cost_estimate=pl.CostEstimate(
            flops=flops,
            transcendentals=n_iters * BN * Dout,        # exp in the softmax
            bytes_accessed=bytes_accessed),
    )(P_bd, X_flat, Y_flat, params)

    return out_flat.reshape(B, N, Dout)


# ----------------------------- glue (padding) --------------------------------

def _pad_sequences(arrs, max_len):
    """torch pad_sequence(batch_first=True) equivalent: zero-pad along axis 0."""
    out = []
    for a in arrs:
        pad = max_len - a.shape[0]
        cfg = [(0, pad)] + [(0, 0)] * (a.ndim - 1)
        out.append(jnp.pad(a, cfg))
    return jnp.stack(out).astype(jnp.float32)


def _pad_sequence_2d(Ps, max_len):
    """pad each (n_i, n_i) adjacency matrix to (max_len, max_len) with zeros."""
    out = []
    for p in Ps:
        n = p.shape[0]
        out.append(jnp.pad(p, ((0, max_len - n), (0, max_len - n))))
    return jnp.stack(out).astype(jnp.float32)


def reference_round(P_pad, X_pad, Y, W_cat, bias):
    """Plain-JAX reference matching one PyTorch forward() pass."""
    col_l1 = jnp.maximum(jnp.sum(jnp.abs(P_pad), axis=1, keepdims=True), 1e-12)
    P_norm = P_pad / col_l1
    T = jnp.einsum("bij,bjk->bik", P_norm, Y)
    H = jnp.concatenate([X_pad, T], axis=-1)
    logits = H @ W_cat + bias
    return jax.nn.softmax(logits, axis=-1)


def reference_forward(P_pad, X_pad, Y_pad, W_cat, bias, n_iters=1):
    y = Y_pad
    for _ in range(n_iters):
        y = reference_round(P_pad, X_pad, y, W_cat, bias)
    return y


if __name__ == "__main__":
    # Small shapes consistent with the module: graphs with up to N=16 nodes,
    # input_size (node feature dim) = 32, output_size (num classes) = 8.
    input_size, output_size = 32, 8
    bias_flag = True
    N_max = 16
    lengths = [16, 12]                       # two graphs of different size
    B = len(lengths)

    key = jax.random.PRNGKey(0)
    k_p, k_x, k_y, k_w, k_b = jax.random.split(key, 5)

    # Per-graph adjacency matrices, node features, current label distributions.
    Ps, Xs, Ys = [], [], []
    kp, kx, ky = k_p, k_x, k_y
    for n in lengths:
        kp, sp = jax.random.split(kp)
        kx, sx = jax.random.split(kx)
        ky, sy = jax.random.split(ky)
        Ps.append(jax.random.uniform(sp, (n, n), jnp.float32))
        Xs.append(jax.random.normal(sx, (n, input_size), jnp.float32))
        y_logits = jax.random.normal(sy, (n, output_size), jnp.float32)
        Ys.append(jax.nn.softmax(y_logits, axis=-1))

    # Glue: padding (pad_sequence / pad_sequence_2d equivalents) in plain JAX.
    P_pad = _pad_sequence_2d(Ps, N_max)           # (B, N, N)
    X_pad = _pad_sequences(Xs, N_max)             # (B, N, Din)
    Y_pad = _pad_sequences(Ys, N_max)             # (B, N, Dout)

    # Deterministic parameter init (PyTorch Linear-style uniform).
    fan_in = input_size + output_size
    bound = 1.0 / np.sqrt(fan_in)
    W = jax.random.uniform(k_w, (output_size, fan_in), jnp.float32,
                           minval=-bound, maxval=bound)
    b = (jax.random.uniform(k_b, (1, output_size), jnp.float32,
                            minval=-bound, maxval=bound)
         if bias_flag else jnp.zeros((1, output_size), jnp.float32))

    # concat([X, T]) @ W^T == [X | T] @ W.T -> pass W transposed, (Din+Dout, Dout).
    W_cat = W.T

    # 1) Single round == the module's forward().
    out1 = jax.block_until_ready(
        general_crf_forward(P_pad, X_pad, Y_pad, W_cat, b, n_iters=1))
    ref1 = reference_forward(P_pad, X_pad, Y_pad, W_cat, b, n_iters=1)
    np.testing.assert_allclose(np.asarray(out1), np.asarray(ref1),
                               rtol=1e-3, atol=1e-3)
    assert out1.shape == (B, N_max, output_size)

    # 2) Fused multi-round (predict_proba-style iteration amortized in-kernel).
    out3 = jax.block_until_ready(
        general_crf_forward(P_pad, X_pad, Y_pad, W_cat, b, n_iters=3))
    ref3 = reference_forward(P_pad, X_pad, Y_pad, W_cat, b, n_iters=3)
    np.testing.assert_allclose(np.asarray(out3), np.asarray(ref3),
                               rtol=2e-3, atol=2e-3)
    assert out3.shape == (B, N_max, output_size)

    print("KERNEL_OK")
</pallas_src>

<mosaic_0001>
module attributes {stable_mosaic.version = 11 : i64} {
  func.func @_crf_kernel(%arg0: memref<32x32xf32, #tpu.memory_space<vmem>>, %arg1: memref<32x32xf32, #tpu.memory_space<vmem>>, %arg2: memref<32x8xf32, #tpu.memory_space<vmem>>, %arg3: memref<41x8xf32, #tpu.memory_space<vmem>>, %arg4: memref<32x8xf32, #tpu.memory_space<vmem>>) attributes {dimension_semantics = [], scalar_prefetch = 0 : i64, scratch_operands = 0 : i64, tpu.core_type = #tpu.core_type<tc>} {
    %c0 = arith.constant 0 : index
    %c0_0 = arith.constant 0 : index
    %0 = vector.load %arg0[%c0, %c0_0] : memref<32x32xf32, #tpu.memory_space<vmem>>, vector<32x32xf32>
    %1 = math.absf %0 : vector<32x32xf32>
    %cst = arith.constant dense<0.000000e+00> : vector<32xf32>
    %2 = vector.multi_reduction <add>, %1, %cst [0] : vector<32x32xf32> to vector<32xf32>
    %3 = vector.shape_cast %2 : vector<32xf32> to vector<1x32xf32>
    %cst_1 = arith.constant 9.99999996E-13 : f32
    %4 = vector.broadcast %cst_1 : f32 to vector<1x32xf32>
    %5 = arith.maximumf %3, %4 : vector<1x32xf32>
    %6 = vector.broadcast %5 : vector<1x32xf32> to vector<32x32xf32>
    %7 = arith.divf %0, %6 : vector<32x32xf32>
    %c0_2 = arith.constant 0 : index
    %c0_3 = arith.constant 0 : index
    %8 = vector.load %arg3[%c0_2, %c0_3] : memref<41x8xf32, #tpu.memory_space<vmem>>, vector<32x8xf32>
    %c32 = arith.constant 32 : index
    %c0_4 = arith.constant 0 : index
    %9 = vector.load %arg3[%c32, %c0_4] : memref<41x8xf32, #tpu.memory_space<vmem>>, vector<8x8xf32>
    %c40 = arith.constant 40 : index
    %c0_5 = arith.constant 0 : index
    %10 = vector.load %arg3[%c40, %c0_5] : memref<41x8xf32, #tpu.memory_space<vmem>>, vector<1x8xf32>
    %c0_6 = arith.constant 0 : index
    %c0_7 = arith.constant 0 : index
    %11 = vector.load %arg1[%c0_6, %c0_7] : memref<32x32xf32, #tpu.memory_space<vmem>>, vector<32x32xf32>
    %cst_8 = arith.constant dense<0.000000e+00> : vector<32x8xf32>
    %12 = tpu.matmul %11, %8, %cst_8 {dimension_numbers = #tpu.dot_dimension_numbers<[1], [0], [0], [1], [0, 0, 1, 1], [], []>} : vector<32x32xf32>, vector<32x8xf32>, vector<32x8xf32> -> vector<32x8xf32>
    %13 = vector.broadcast %10 : vector<1x8xf32> to vector<32x8xf32>
    %14 = arith.addf %12, %13 : vector<32x8xf32>
    %c0_9 = arith.constant 0 : index
    %c0_10 = arith.constant 0 : index
    %15 = vector.load %arg2[%c0_9, %c0_10] : memref<32x8xf32, #tpu.memory_space<vmem>>, vector<32x8xf32>
    %c0_i32 = arith.constant 0 : i32
    %cst_11 = arith.constant dense<0.000000e+00> : vector<32x8xf32>
    %16 = tpu.matmul %7, %15, %cst_11 {dimension_numbers = #tpu.dot_dimension_numbers<[1], [0], [0], [1], [0, 0, 1, 1], [], []>} : vector<32x32xf32>, vector<32x8xf32>, vector<32x8xf32> -> vector<32x8xf32>
    %cst_12 = arith.constant dense<0.000000e+00> : vector<32x8xf32>
    %17 = tpu.matmul %16, %9, %cst_12 {dimension_numbers = #tpu.dot_dimension_numbers<[1], [0], [0], [1], [0, 0, 1, 1], [], []>} : vector<32x8xf32>, vector<8x8xf32>, vector<32x8xf32> -> vector<32x8xf32>
    %18 = arith.addf %14, %17 : vector<32x8xf32>
    %cst_13 = arith.constant dense<0xFF800000> : vector<32xf32>
    %19 = vector.multi_reduction <maximumf>, %18, %cst_13 [1] : vector<32x8xf32> to vector<32xf32>
    %20 = vector.shape_cast %19 : vector<32xf32> to vector<32x1xf32>
    %21 = vector.broadcast %20 : vector<32x1xf32> to vector<32x8xf32>
    %22 = arith.subf %18, %21 : vector<32x8xf32>
    %23 = math.exp %22 : vector<32x8xf32>
    %cst_14 = arith.constant dense<0.000000e+00> : vector<32xf32>
    %24 = vector.multi_reduction <add>, %23, %cst_14 [1] : vector<32x8xf32> to vector<32xf32>
    %25 = vector.shape_cast %24 : vector<32xf32> to vector<32x1xf32>
    %26 = vector.broadcast %25 : vector<32x1xf32> to vector<32x8xf32>
    %27 = arith.divf %23, %26 : vector<32x8xf32>
    %c0_15 = arith.constant 0 : index
    %c0_16 = arith.constant 0 : index
    %28 = vector.load %arg4[%c0_15, %c0_16] : memref<32x8xf32, #tpu.memory_space<vmem>>, vector<32x8xf32>
    tpu.vector_store %arg4[%c0_15, %c0_16], %27 {strides = array<i32>} : memref<32x8xf32, #tpu.memory_space<vmem>>, vector<32x8xf32>,
    return
  }
}

</mosaic_0001>

<llo_original>
// kernel: general_crf_forward.1
$region0: #{general_crf_forward.1}
  #allocation0 [shape = 'u32[]', space=smem, size = 0x4, offset = 0x4, fixed_abs, tag = 'smem constant byte address 0x4 - core index']
  #allocation1 [shape = 'u32[72,128]{1,0:T(1,128)}', space=vmem, size = 0x9000, scoped, tag = 'internal scratch']
  %s0 = inlined_call_operand.vmem [shape: f32[32,32], index: 0, kind: input, shape index: {}]
  %s1 = inlined_call_operand.vmem [shape: f32[32,32], index: 1, kind: input, shape index: {}]
  %s2 = inlined_call_operand.vmem [shape: f32[32,8], index: 2, kind: input, shape index: {}]
  %s3 = inlined_call_operand.vmem [shape: f32[41,8], index: 3, kind: input, shape index: {}]
  %s4 = inlined_call_operand.vmem [shape: f32[32,8], index: 4, kind: output, shape index: {}]
  %s5 = sld [smem:[#allocation0]]
  $region26: #{general_crf_forward.1} parent=0
    _
  %s7 = ssub.s32 1, %s5
  %s8 = scalar_select 0, %s7, %s5
  // Predicated region
  $region2: #{general_crf_forward.1} parent=0 // pred_check
    _
  $region3: #{general_crf_forward.1} parent=0 // pred_check_branch
    %10 = sbr.rel (0) target = $region5
  $region4: #{general_crf_forward.1} parent=0 // pred_region
    _
  $region5: #{general_crf_forward.1} parent=0 // pred_fallthru
    _
  // Predicated region
  $region6: #{general_crf_forward.1} parent=0 // pred_check
    _
  $region7: #{general_crf_forward.1} parent=0 // pred_check_branch
    %12 = sbr.rel (0) target = $region9
  $region8: #{general_crf_forward.1} parent=0 // pred_region
    _
  $region9: #{general_crf_forward.1} parent=0 // pred_fallthru
    _
  // Predicated region
  $region10: #{general_crf_forward.1} parent=0 // pred_check
    _
  $region11: #{general_crf_forward.1} parent=0 // pred_check_branch
    %14 = sbr.rel (0) target = $region13
  $region12: #{general_crf_forward.1} parent=0 // pred_region
    _
  $region13: #{general_crf_forward.1} parent=0 // pred_fallthru
    _
  // Predicated region
  $region14: #{general_crf_forward.1} parent=0 // pred_check
    _
  $region15: #{general_crf_forward.1} parent=0 // pred_check_branch
    %16 = sbr.rel (0) target = $region17
  $region16: #{general_crf_forward.1} parent=0 // pred_region
    _
  $region17: #{general_crf_forward.1} parent=0 // pred_fallthru
    _
  %v17 = vld [vmem:[%s0] sm:$0xff]
  %v18 = vld [vmem:[%s0 + $0x8] sm:$0xff]
  %v19 = vld [vmem:[%s0 + $0x10] sm:$0xff]
  %v20 = vld [vmem:[%s0 + $0x18] sm:$0xff]
  %v21 = vand.u32 2147483647, %v17
  %v22 = vand.u32 2147483647, %v18
  %v23 = vand.u32 2147483647, %v19
  %v24 = vand.u32 2147483647, %v20
  %vm25 = vcmask 261120
  %v26 = vsel %vm25, %v21, 0.0
  %v27 = vsel %vm25, %v22, 0.0
  %v28 = vadd.f32 %v26, %v27
  %v29 = vsel %vm25, %v23, 0.0
  %v30 = vadd.f32 %v28, %v29
  %v31 = vsel %vm25, %v24, 0.0
  %v32 = vadd.f32 %v30, %v31
  %v33 = vrot.slane %v32, 4
  %v34 = vadd.f32 %v32, %v33
  %v35 = vrot.slane %v34, 2
  %v36 = vadd.f32 %v34, %v35
  %v37 = vrot.slane %v36, 1
  %v38 = vadd.f32 %v36, %v37
  %v39 = vmax.f32 %v38, 1e-12
  %v40 = vrcp.pop %v39
  %v41 = vmul.f32 %v39, %v40
  %v42 = vsub.f32 1.0, %v41
  %v43 = vmul.f32 %v40, %v42
  %v44 = vadd.f32 %v40, %v43
  %vm45 = vweird.f32 %v39
  %vm46 = vweird.f32 %v40
  %vm47 = vmor %vm45, %vm46
  %v48 = vsel %vm47, %v40, %v44
  %v49 = vand.u32 2147483647, %v39
  %vm50 = vcmp.eq.f32.partialorder %v49, 8.507059e+37
  %v51 = vand.u32 %v39, 2147483648
  %v52 = vor.u32 1.1754944e-38, %v51
  %v53 = vsel %vm50, %v52, %v48
  %v54 = vmul.f32 %v17, %v53
  %v55 = vmul.f32 %v18, %v53
  %v56 = vmul.f32 %v19, %v53
  %v57 = vmul.f32 %v20, %v53
  %v58 = vld [vmem:[%s3] sm:$0xff]
  %v59 = vld [vmem:[%s3 + $0x8] sm:$0xff]
  %v60 = vld [vmem:[%s3 + $0x10] sm:$0xff]
  %v61 = vld [vmem:[%s3 + $0x18] sm:$0xff]
  %v62 = vld [vmem:[%s3 + $0x20] sm:$0xff]
  %v63 = vld [vmem:[%s3 + $0x28] sm:$0x1]
  %v64 = vld [vmem:[%s1] sm:$0xff]
  %v65 = vld [vmem:[%s1 + $0x8] sm:$0xff]
  %v66 = vld [vmem:[%s1 + $0x10] sm:$0xff]
  %v67 = vld [vmem:[%s1 + $0x18] sm:$0xff]
  %v68 = vperm.slane %v63, 0
  %v70 = vsel %vm25, %v64, 0
  %v73 = vsel %vm25, %v65, 0
  %v76 = vsel %vm25, %v66, 0
  %v79 = vsel %vm25, %v67, 0
  %81 = vmatpush.msra.mxu0 0.0
  %82 = vmatpush.msra.mxu0 0.0
  %83 = vmatpush.msra.mxu0 0.0
  %84 = vmatpush.msra.mxu0 0.0
  %85 = vmatpush.msra.mxu0 0.0
  %86 = vmatpush.msra.mxu0 0.0
  %87 = vmatpush.msra.mxu0 0.0
  %88 = vmatpush.msra.mxu0 0.0
  %89 = vmatpush.msra.mxu0 0.0
  %90 = vmatpush.msra.mxu0 0.0
  %91 = vmatpush.msra.mxu0 0.0
  %92 = vmatpush.msra.mxu0 0.0
  %93 = vmatpush.msra.mxu0 %v61
  %94 = vmatpush.msra.mxu0 %v60
  %95 = vmatpush.msra.mxu0 %v59
  %96 = vmatpush.msra.mxu0 %v58
  %97 = vmatmul.f32.gmra.mxu0 %v70
  %v98 = vpop.f32.mrf.mxu0
  %v99 = vadd.f32 %v68, %v98
  %100 = vmatmul.f32.gmra.mxu0 %v73
  %v101 = vpop.f32.mrf.mxu0
  %v102 = vadd.f32 %v68, %v101
  %103 = vmatmul.f32.gmra.mxu0 %v76
  %v104 = vpop.f32.mrf.mxu0
  %v105 = vadd.f32 %v68, %v104
  %106 = vmatmul.f32.gmra.mxu0 %v79
  %v107 = vpop.f32.mrf.mxu0
  %v108 = vadd.f32 %v68, %v107
  %109 = vdwg.mxu0
  %v110 = vld [vmem:[%s2] sm:$0xff]
  %v111 = vld [vmem:[%s2 + $0x8] sm:$0xff]
  %v112 = vld [vmem:[%s2 + $0x10] sm:$0xff]
  %v113 = vld [vmem:[%s2 + $0x18] sm:$0xff]
  %v115 = vsel %vm25, %v54, 0
  %v118 = vsel %vm25, %v55, 0
  %v121 = vsel %vm25, %v56, 0
  %v124 = vsel %vm25, %v57, 0
  %126 = vmatpush.msra.mxu0 0.0
  %127 = vmatpush.msra.mxu0 0.0
  %128 = vmatpush.msra.mxu0 0.0
  %129 = vmatpush.msra.mxu0 0.0
  %130 = vmatpush.msra.mxu0 0.0
  %131 = vmatpush.msra.mxu0 0.0
  %132 = vmatpush.msra.mxu0 0.0
  %133 = vmatpush.msra.mxu0 0.0
  %134 = vmatpush.msra.mxu0 0.0
  %135 = vmatpush.msra.mxu0 0.0
  %136 = vmatpush.msra.mxu0 0.0
  %137 = vmatpush.msra.mxu0 0.0
  %138 = vmatpush.msra.mxu0 %v113
  %139 = vmatpush.msra.mxu0 %v112
  %140 = vmatpush.msra.mxu0 %v111
  %141 = vmatpush.msra.mxu0 %v110
  %142 = vmatmul.f32.gmra.mxu0 %v115
  %v143 = vpop.f32.mrf.mxu0
  %v144 = vadd.f32 0.0, %v143
  %145 = vmatmul.f32.gmra.mxu0 %v118
  %v146 = vpop.f32.mrf.mxu0
  %v147 = vadd.f32 0.0, %v146
  %148 = vmatmul.f32.gmra.mxu0 %v121
  %v149 = vpop.f32.mrf.mxu0
  %v150 = vadd.f32 0.0, %v149
  %151 = vmatmul.f32.gmra.mxu0 %v124
  %v152 = vpop.f32.mrf.mxu0
  %v153 = vadd.f32 0.0, %v152
  %154 = vdwg.mxu0
  %vm155 = vcmask 64512
  %v157 = vsel %vm155, %v144, 0
  %v160 = vsel %vm155, %v147, 0
  %v163 = vsel %vm155, %v150, 0
  %v166 = vsel %vm155, %v153, 0
  %168 = vmatpush.msra.mxu0 0.0
  %169 = vmatpush.msra.mxu0 0.0
  %170 = vmatpush.msra.mxu0 0.0
  %171 = vmatpush.msra.mxu0 0.0
  %172 = vmatpush.msra.mxu0 0.0
  %173 = vmatpush.msra.mxu0 0.0
  %174 = vmatpush.msra.mxu0 0.0
  %175 = vmatpush.msra.mxu0 0.0
  %176 = vmatpush.msra.mxu0 0.0
  %177 = vmatpush.msra.mxu0 0.0
  %178 = vmatpush.msra.mxu0 0.0
  %179 = vmatpush.msra.mxu0 0.0
  %180 = vmatpush.msra.mxu0 0.0
  %181 = vmatpush.msra.mxu0 0.0
  %182 = vmatpush.msra.mxu0 0.0
  %183 = vmatpush.msra.mxu0 %v62
  %184 = vmatmul.f32.gmra.mxu0 %v157
  %v185 = vpop.f32.mrf.mxu0
  %v186 = vadd.f32 0.0, %v185
  %187 = vmatmul.f32.gmra.mxu0 %v160
  %v188 = vpop.f32.mrf.mxu0
  %v189 = vadd.f32 0.0, %v188
  %190 = vmatmul.f32.gmra.mxu0 %v163
  %v191 = vpop.f32.mrf.mxu0
  %v192 = vadd.f32 0.0, %v191
  %193 = vmatmul.f32.gmra.mxu0 %v166
  %v194 = vpop.f32.mrf.mxu0
  %v195 = vadd.f32 0.0, %v194
  %196 = vdwg.mxu0
  %v197 = vadd.f32 %v99, %v186
  %v198 = vadd.f32 %v102, %v189
  %v199 = vadd.f32 %v105, %v192
  %v200 = vadd.f32 %v108, %v195
  %v201 = vsel %vm155, %v197, -inf
  %202 = vmax.xlane.f32.xlu0 %v201
  %v203 = vpop.xlane.xlu0 %202
  %v204 = vsel %vm155, %v198, -inf
  %205 = vmax.xlane.f32.xlu0 %v204
  %v206 = vpop.xlane.xlu0 %205
  %v207 = vsel %vm155, %v199, -inf
  %208 = vmax.xlane.f32.xlu0 %v207
  %v209 = vpop.xlane.xlu0 %208
  %v210 = vsel %vm155, %v200, -inf
  %211 = vmax.xlane.f32.xlu0 %v210
  %v212 = vpop.xlane.xlu0 %211
  %v213 = vsub.f32 %v197, %v203
  %v214 = vsub.f32 %v198, %v206
  %v215 = vsub.f32 %v199, %v209
  %v216 = vsub.f32 %v200, %v212
  %v217 = vmul.f32 %v213, 1.442695
  %v218 = vpow.pop %v217
  %v219 = vmul.f32 %v214, 1.442695
  %v220 = vpow.pop %v219
  %v221 = vmul.f32 %v215, 1.442695
  %v222 = vpow.pop %v221
  %v223 = vmul.f32 %v216, 1.442695
  %v224 = vpow.pop %v223
  %v225 = vsel %vm155, %v218, 0.0
  %226 = vadd.xlane.f32.xlu0 %v225
  %v227 = vpop.xlane.xlu0 %226
  %v228 = vsel %vm155, %v220, 0.0
  %229 = vadd.xlane.f32.xlu0 %v228
  %v230 = vpop.xlane.xlu0 %229
  %v231 = vsel %vm155, %v222, 0.0
  %232 = vadd.xlane.f32.xlu0 %v231
  %v233 = vpop.xlane.xlu0 %232
  %v234 = vsel %vm155, %v224, 0.0
  %235 = vadd.xlane.f32.xlu0 %v234
  %v236 = vpop.xlane.xlu0 %235
  %v237 = vrcp.pop %v227
  %v238 = vmul.f32 %v227, %v237
  %v239 = vsub.f32 1.0, %v238
  %v240 = vmul.f32 %v237, %v239
  %v241 = vadd.f32 %v237, %v240
  %vm242 = vweird.f32 %v227
  %vm243 = vweird.f32 %v237
  %vm244 = vmor %vm242, %vm243
  %v245 = vsel %vm244, %v237, %v241
  %v246 = vand.u32 2147483647, %v227
  %vm247 = vcmp.eq.f32.partialorder %v246, 8.507059e+37
  %v248 = vand.u32 %v227, 2147483648
  %v249 = vor.u32 1.1754944e-38, %v248
  %v250 = vsel %vm247, %v249, %v245
  %v251 = vmul.f32 %v218, %v250
  %v252 = vrcp.pop %v230
  %v253 = vmul.f32 %v230, %v252
  %v254 = vsub.f32 1.0, %v253
  %v255 = vmul.f32 %v252, %v254
  %v256 = vadd.f32 %v252, %v255
  %vm257 = vweird.f32 %v230
  %vm258 = vweird.f32 %v252
  %vm259 = vmor %vm257, %vm258
  %v260 = vsel %vm259, %v252, %v256
  %v261 = vand.u32 2147483647, %v230
  %vm262 = vcmp.eq.f32.partialorder %v261, 8.507059e+37
  %v263 = vand.u32 %v230, 2147483648
  %v264 = vor.u32 1.1754944e-38, %v263
  %v265 = vsel %vm262, %v264, %v260
  %v266 = vmul.f32 %v220, %v265
  %v267 = vrcp.pop %v233
  %v268 = vmul.f32 %v233, %v267
  %v269 = vsub.f32 1.0, %v268
  %v270 = vmul.f32 %v267, %v269
  %v271 = vadd.f32 %v267, %v270
  %vm272 = vweird.f32 %v233
  %vm273 = vweird.f32 %v267
  %vm274 = vmor %vm272, %vm273
  %v275 = vsel %vm274, %v267, %v271
  %v276 = vand.u32 2147483647, %v233
  %vm277 = vcmp.eq.f32.partialorder %v276, 8.507059e+37
  %v278 = vand.u32 %v233, 2147483648
  %v279 = vor.u32 1.1754944e-38, %v278
  %v280 = vsel %vm277, %v279, %v275
  %v281 = vmul.f32 %v222, %v280
  %v282 = vrcp.pop %v236
  %v283 = vmul.f32 %v236, %v282
  %v284 = vsub.f32 1.0, %v283
  %v285 = vmul.f32 %v282, %v284
  %v286 = vadd.f32 %v282, %v285
  %vm287 = vweird.f32 %v236
  %vm288 = vweird.f32 %v282
  %vm289 = vmor %vm287, %vm288
  %v290 = vsel %vm289, %v282, %v286
  %v291 = vand.u32 2147483647, %v236
  %vm292 = vcmp.eq.f32.partialorder %v291, 8.507059e+37
  %v293 = vand.u32 %v236, 2147483648
  %v294 = vor.u32 1.1754944e-38, %v293
  %v295 = vsel %vm292, %v294, %v290
  %v296 = vmul.f32 %v224, %v295
  %297 = vst.msk [vmem:[%s4] sm:$0xff] %vm155, %v251
  %298 = vst.msk [vmem:[%s4 + $0x8] sm:$0xff] %vm155, %v266
  %299 = vst.msk [vmem:[%s4 + $0x10] sm:$0xff] %vm155, %v281
  %300 = vst.msk [vmem:[%s4 + $0x18] sm:$0xff] %vm155, %v296
  // Predicated region
  $region18: #{general_crf_forward.1} parent=0 // pred_check
    _
  $region19: #{general_crf_forward.1} parent=0 // pred_check_branch
    %302 = sbr.rel (0) target = $region21
  $region20: #{general_crf_forward.1} parent=0 // pred_region
    _
  $region21: #{general_crf_forward.1} parent=0 // pred_fallthru
    _
  // Predicated region
  $region22: #{general_crf_forward.1} parent=0 // pred_check
    _
  $region23: #{general_crf_forward.1} parent=0 // pred_check_branch
    %304 = sbr.rel (0) target = $region25
  $region24: #{general_crf_forward.1} parent=0 // pred_region
    _
  $region25: #{general_crf_forward.1} parent=0 // pred_fallthru
    _

</llo_original>
